<compile_context>
chip_gen: v7x
topology: tpu7x:2x2x1
jax: 0.10.0
libtpu: 0.0.40
codegen_flags: <defaults>
</compile_context>

<pallas_src>
import numpy as np
import jax
import jax.numpy as jnp
from jax.experimental import pallas as pl
from jax.experimental.pallas import tpu as pltpu


def _rbf_kernel(xT_ref, mu_ref, w_ref, o_ref):
    # xT_ref : (d, bn)  -- batch on lanes, features on sublanes
    # mu_ref : (d, 1)   -- RBF center (float32)
    # w_ref  : (d, 1)   -- 1/scale   (float32)
    # o_ref  : (1, bn)  -- lane-dense output tile
    x = xT_ref[...].astype(jnp.float32)                               # (d, bn)
    delta = x - mu_ref[...]                                           # (d, bn)
    s = jnp.sum(delta * delta * w_ref[...], axis=0, keepdims=True)    # (1, bn)
    o_ref[...] = jnp.exp(-s).astype(o_ref.dtype)


def _pick_block_n(n, d, itemsize):
    """Largest lane tile that (a) amortizes per-grid-step overhead and
    (b) keeps the double-buffered x stream comfortably inside the scoped-VMEM
    default on every generation (incl. v7x's 64 MiB physical VMEM)."""
    if n <= 256:
        return n                           # single full-extent block, always legal
    target_bytes = 2 << 20                 # ~2 MiB per x buffer (x2 double-buffered)
    bn = target_bytes // max(d * itemsize, 1)
    bn = max(512, min(int(bn), 65536))
    bn = (bn // 128) * 128                 # lane-aligned (multiple of 128)
    n_padded = ((n + 127) // 128) * 128
    return min(bn, n_padded)


def gaussian_rbf_forward(x, mu, scale, dim=None):
    """Pallas equivalent of PyTorchGaussianRBF(mu, scale, dim).forward(x)."""
    n = x.shape[0]
    dtype = x.dtype

    mu_f = jnp.asarray(mu, jnp.float32).reshape(-1)
    inv_scale = 1.0 / jnp.asarray(scale, jnp.float32).reshape(-1)   # hoisted divide

    # Column selection (torch.index_select on axis 1) folded into the same
    # wrapper pass that produces the lane-dense (d, N) layout.
    if dim is None:
        xT = jnp.transpose(x)                                    # (d, N)
    else:
        dim_np = np.asarray(dim).reshape(-1)
        xT = jnp.transpose(x[:, dim_np])                         # (d_sel, N)
    d_used = xT.shape[0]

    mu_col = mu_f.reshape(d_used, 1)
    w_col = inv_scale.reshape(d_used, 1)

    block_n = _pick_block_n(n, d_used, x.dtype.itemsize)
    grid = (pl.cdiv(n, block_n),)

    out = pl.pallas_call(
        _rbf_kernel,
        out_shape=jax.ShapeDtypeStruct((1, n), dtype),
        grid_spec=pltpu.PrefetchScalarGridSpec(
            num_scalar_prefetch=0,
            grid=grid,
            in_specs=[
                pl.BlockSpec((d_used, block_n), lambda i: (0, i)),  # x.T tile
                pl.BlockSpec((d_used, 1), lambda i: (0, 0)),        # mu column
                pl.BlockSpec((d_used, 1), lambda i: (0, 0)),        # 1/scale col
            ],
            out_specs=pl.BlockSpec((1, block_n), lambda i: (0, i)),
        ),
        compiler_params=pltpu.CompilerParams(
            dimension_semantics=("parallel",)),
    )(xT, mu_col, w_col)
    return out.reshape(n)


def _reference(x, mu, scale, dim=None):
    if dim is not None:
        x = x[:, np.asarray(dim).reshape(-1)]
    delta = x - mu.reshape(1, -1)
    return jnp.exp(-jnp.sum(delta * delta / scale.reshape(1, -1), axis=1))


if __name__ == "__main__":
    key = jax.random.PRNGKey(0)
    k1, k2 = jax.random.split(key)

    # Case 1: with `dim` selection (matches the module's index_select path).
    D_total, d, N = 6, 4, 16
    dim = np.array([0, 2, 3, 5], dtype=np.int32)
    mu = np.linspace(-1.0, 1.0, d).astype(np.float32)
    scale = (0.5 + 0.25 * np.arange(d)).astype(np.float32)
    x = jax.random.normal(k1, (N, D_total), dtype=jnp.float32)

    out = jax.block_until_ready(gaussian_rbf_forward(x, mu, scale, dim))
    ref = _reference(x, jnp.asarray(mu), jnp.asarray(scale), dim)
    assert out.shape == (N,), out.shape
    np.testing.assert_allclose(np.asarray(out), np.asarray(ref),
                               rtol=1e-5, atol=1e-6)

    # Case 2: no `dim`, batch > 256 to exercise the lane-tiled grid path
    # (partial last tile -> masked writeback handled by Pallas).
    D2, N2 = 8, 300
    mu2 = np.linspace(-0.5, 0.5, D2).astype(np.float32)
    scale2 = (0.3 + 0.1 * np.arange(D2)).astype(np.float32)
    x2 = jax.random.normal(k2, (N2, D2), dtype=jnp.float32)

    out2 = jax.block_until_ready(gaussian_rbf_forward(x2, mu2, scale2, None))
    ref2 = _reference(x2, jnp.asarray(mu2), jnp.asarray(scale2), None)
    assert out2.shape == (N2,), out2.shape
    np.testing.assert_allclose(np.asarray(out2), np.asarray(ref2),
                               rtol=1e-5, atol=1e-6)

    print("KERNEL_OK")
</pallas_src>

<mosaic_0001>
module attributes {stable_mosaic.version = 11 : i64} {
  func.func @_rbf_kernel(%arg0: i32, %arg1: memref<4x16xf32, #tpu.memory_space<vmem>>, %arg2: memref<4x1xf32, #tpu.memory_space<vmem>>, %arg3: memref<4x1xf32, #tpu.memory_space<vmem>>, %arg4: memref<1x16xf32, #tpu.memory_space<vmem>>) attributes {dimension_semantics = [#tpu.dimension_semantics<parallel>], iteration_bounds = array<i64: 1>, scalar_prefetch = 0 : i64, scratch_operands = 0 : i64, tpu.core_type = #tpu.core_type<tc>, window_params = [{transform_indices = @transform_0, window_bounds = array<i64: 4, 16>}, {pipeline_mode = #tpu.pipeline_mode<synchronous>, transform_indices = @transform_1, window_bounds = array<i64: 4, 1>}, {pipeline_mode = #tpu.pipeline_mode<synchronous>, transform_indices = @transform_2, window_bounds = array<i64: 4, 1>}, {transform_indices = @transform_3, window_bounds = array<i64: 1, 16>}]} {
    %c0 = arith.constant 0 : index
    %c0_0 = arith.constant 0 : index
    %0 = vector.load %arg1[%c0, %c0_0] : memref<4x16xf32, #tpu.memory_space<vmem>>, vector<4x16xf32>
    %c0_1 = arith.constant 0 : index
    %c0_2 = arith.constant 0 : index
    %1 = vector.load %arg2[%c0_1, %c0_2] : memref<4x1xf32, #tpu.memory_space<vmem>>, vector<4x1xf32>
    %2 = vector.broadcast %1 : vector<4x1xf32> to vector<4x16xf32>
    %3 = arith.subf %0, %2 : vector<4x16xf32>
    %4 = arith.mulf %3, %3 : vector<4x16xf32>
    %c0_3 = arith.constant 0 : index
    %c0_4 = arith.constant 0 : index
    %5 = vector.load %arg3[%c0_3, %c0_4] : memref<4x1xf32, #tpu.memory_space<vmem>>, vector<4x1xf32>
    %6 = vector.broadcast %5 : vector<4x1xf32> to vector<4x16xf32>
    %7 = arith.mulf %4, %6 : vector<4x16xf32>
    %cst = arith.constant dense<0.000000e+00> : vector<16xf32>
    %8 = vector.multi_reduction <add>, %7, %cst [0] : vector<4x16xf32> to vector<16xf32>
    %9 = vector.shape_cast %8 : vector<16xf32> to vector<1x16xf32>
    %cst_5 = arith.constant 0.000000e+00 : f32
    %10 = vector.broadcast %cst_5 : f32 to vector<1x16xf32>
    %11 = arith.subf %10, %9 : vector<1x16xf32>
    %12 = math.exp %11 : vector<1x16xf32>
    %c0_6 = arith.constant 0 : index
    %c0_7 = arith.constant 0 : index
    %13 = vector.load %arg4[%c0_6, %c0_7] : memref<1x16xf32, #tpu.memory_space<vmem>>, vector<1x16xf32>
    tpu.vector_store %arg4[%c0_6, %c0_7], %12 {strides = array<i32>} : memref<1x16xf32, #tpu.memory_space<vmem>>, vector<1x16xf32>,
    return
  }
  func.func @transform_0(%arg0: i32) -> (i32, i32) {
    %c0_i32 = arith.constant 0 : i32
    %c0_i32_0 = arith.constant 0 : i32
    return %c0_i32, %arg0 : i32, i32
  }
  func.func @transform_1(%arg0: i32) -> (i32, i32) {
    %c0_i32 = arith.constant 0 : i32
    %c0_i32_0 = arith.constant 0 : i32
    %c0_i32_1 = arith.constant 0 : i32
    return %c0_i32, %c0_i32_0 : i32, i32
  }
  func.func @transform_2(%arg0: i32) -> (i32, i32) {
    %c0_i32 = arith.constant 0 : i32
    %c0_i32_0 = arith.constant 0 : i32
    %c0_i32_1 = arith.constant 0 : i32
    return %c0_i32, %c0_i32_0 : i32, i32
  }
  func.func @transform_3(%arg0: i32) -> (i32, i32) {
    %c0_i32 = arith.constant 0 : i32
    %c0_i32_0 = arith.constant 0 : i32
    return %c0_i32, %arg0 : i32, i32
  }
}

</mosaic_0001>

<llo_original>
// kernel: tpu_custom_call.1
$region0: #{tpu_custom_call.1}
  #allocation0 [shape = 'u32[]', space=smem, size = 0x4, offset = 0x4, fixed_abs, tag = 'smem constant byte address 0x4 - core index']
  #allocation1 [shape = 'u32[144,128]{1,0:T(1,128)}', space=vmem, size = 0x12000, scoped, tag = 'internal scratch']
  %s0 = inlined_call_operand.vmem [shape: f32[4,16], index: 0, kind: input, shape index: {}]
  %s1 = inlined_call_operand.vmem [shape: f32[4,1], index: 1, kind: input, shape index: {}]
  %s2 = inlined_call_operand.vmem [shape: f32[4,1], index: 2, kind: input, shape index: {}]
  %s3 = inlined_call_operand.hbm [shape: f32[1,16], index: 3, kind: output, shape index: {}]
  %s4 = sld [smem:[#allocation0]]
  $region22: #{tpu_custom_call.1} parent=0
    _
  %s6 = ssub.s32 1, %s4
  %s7 = scalar_select 0, %s6, %s4
  $region1: #{tpu_custom_call.1} parent=0
    #allocation2 [shape = 'u8[512]{0}', space=vmem, size = 0x400, scoped, tag = 'output window, operand 0, single buffered']
    #allocation3 [shape = 's32[1]{0}', space=sflag, size = 0x4, scoped, tag = 'scoped memory for tpu_custom_call.1']
    %8 = vsyncpa [#allocation3], 0
    // Predicated region
    $region2: #{tpu_custom_call.1} parent=1 // pred_check
      _
    $region3: #{tpu_custom_call.1} parent=1 // pred_check_branch
      %10 = sbr.rel (0) target = $region5
    $region4: #{tpu_custom_call.1} parent=1 // pred_region
      _
    $region5: #{tpu_custom_call.1} parent=1 // pred_fallthru
      _
    // Predicated region
    $region6: #{tpu_custom_call.1} parent=1 // pred_check
      _
    $region7: #{tpu_custom_call.1} parent=1 // pred_check_branch
      %12 = sbr.rel (0) target = $region9
    $region8: #{tpu_custom_call.1} parent=1 // pred_region
      _
    $region9: #{tpu_custom_call.1} parent=1 // pred_fallthru
      _
    // Predicated region
    $region10: #{tpu_custom_call.1} parent=1 // pred_check
      _
    $region11: #{tpu_custom_call.1} parent=1 // pred_check_branch
      %14 = sbr.rel (0) target = $region13
    $region12: #{tpu_custom_call.1} parent=1 // pred_region
      _
    $region13: #{tpu_custom_call.1} parent=1 // pred_fallthru
      _
    %v15 = vld [vmem:[%s0] sm:$0xf]
    %v16 = vld [vmem:[%s1] sm:$0xf]
    %18 = vset.pattern.permute.xlu0 0
    %19 = vperm.xlu0 %18, %v16
    %v20 = vpop.permute.xlu0 %19
    %v22 = vsub.f32 %v15, %v20
    %v23 = vmul.f32 %v22, %v22
    %v24 = vld [vmem:[%s2] sm:$0xf]
    %26 = vset.pattern.permute.xlu0 0
    %27 = vperm.xlu0 %26, %v24
    %v28 = vpop.permute.xlu0 %27
    %v30 = vmul.f32 %v23, %v28
    %vm31 = vcmask 125952
    %v32 = vsel %vm31, %v30, 0.0
    %v33 = vrot.slane %v32, 4
    %v34 = vadd.f32 %v32, %v33
    %v35 = vrot.slane %v34, 2
    %v36 = vadd.f32 %v34, %v35
    %v37 = vrot.slane %v36, 1
    %v38 = vadd.f32 %v36, %v37
    %v39 = vsub.f32 0.0, %v38
    %v40 = vmul.f32 %v39, 1.442695
    %v41 = vpow.pop %v40
    %vm42 = vcmask 122880
    %43 = vst.msk [vmem:[#allocation2] sm:$0x1] %vm42, %v41
    // Predicated region
    $region14: #{tpu_custom_call.1} parent=1 // pred_check
      _
    $region15: #{tpu_custom_call.1} parent=1 // pred_check_branch
      %45 = sbr.rel (0) target = $region17
    $region16: #{tpu_custom_call.1} parent=1 // pred_region
      %s47 = ssub.s32 16, 16
      %48 = vsyncadd [#allocation3], %s47
      %s50 = sshll.u32 [#allocation2], 4
      %s51 = int_to_ptr.vmem [resolvable:$true] %s50
      %53 = dma.vmem_to_hbm [thread:$0]  %s51, 16, %s3, [#allocation3]
    $region17: #{tpu_custom_call.1} parent=1 // pred_fallthru
      _
    // Predicated region
    $region18: #{tpu_custom_call.1} parent=1 // pred_check
      _
    $region19: #{tpu_custom_call.1} parent=1 // pred_check_branch
      %55 = sbr.rel (0) target = $region21
    $region20: #{tpu_custom_call.1} parent=1 // pred_region
      %56 = dma.done [#allocation3], 16
    $region21: #{tpu_custom_call.1} parent=1 // pred_fallthru
      _
    %57 = vsyncpa [#allocation3], 1

</llo_original>
